<compile_context>
chip_gen: v7x
topology: tpu7x:2x2x1
jax: 0.10.0
libtpu: 0.0.40
codegen_flags: <defaults>
</compile_context>

<pallas_src>
import functools
import math

import jax
import jax.numpy as jnp
from jax.experimental import pallas as pl
from jax.experimental.pallas import tpu as pltpu

# The reference module reads a global OUTPUT_EMBEDDING; LightGCN's standard
# behaviour is the mean over layer embeddings, so we fix it to 'mean'.
OUTPUT_EMBEDDING = "mean"


# ---------------------------------------------------------------------------
# helpers
# ---------------------------------------------------------------------------
def _round_up(x, m):
    return ((x + m - 1) // m) * m


def _pad2d(x, rows, cols):
    r, c = x.shape
    if r == rows and c == cols:
        return x
    return jnp.pad(x, ((0, rows - r), (0, cols - c)))


def _vmem_limit(*buffer_bytes):
    """Explicit scoped-VMEM budget: 2x slack over the tile/scratch footprint,
    floor 32 MiB, cap 48 MiB (safe on v7x's 64 MiB physical VMEM)."""
    need = sum(buffer_bytes)
    return int(min(max(2 * need + (4 << 20), 32 << 20), 48 << 20))


def _normalized_dense_adjacency(n_nodes, edge_list, dtype=jnp.float32):
    """A[to, from] = deg^-1/2[from] * deg^-1/2[to]  (dense, f32 glue in JAX)."""
    from_, to_ = edge_list[0], edge_list[1]
    deg = jnp.zeros((n_nodes,), dtype).at[to_].add(1.0)
    deg_inv_sqrt = jnp.where(deg > 0, 1.0 / jnp.sqrt(deg), 0.0)  # inf -> 0
    norm = deg_inv_sqrt[from_] * deg_inv_sqrt[to_]
    return jnp.zeros((n_nodes, n_nodes), dtype).at[to_, from_].add(norm)


# ---------------------------------------------------------------------------
# Path A: small graphs — A resident in VMEM, all layers + mean in one kernel
# ---------------------------------------------------------------------------
def _lightgcn_resident_kernel(a_ref, x0_ref, out_ref, *, num_layers):
    """a_ref: [Np,Np] bf16 adjacency, x0_ref: [Np,D] f32, out_ref: [Np,D] f32."""
    a = a_ref[...]                 # adjacency read from HBM exactly once
    x = x0_ref[...]                # f32 embeddings
    acc = x                        # layer-0 contribution, exact f32
    for _ in range(num_layers):    # small, static, unrolled
        x = jnp.dot(a, x.astype(jnp.bfloat16),          # bf16 MXU, f32 accum
                    preferred_element_type=jnp.float32)
        acc = acc + x
    if OUTPUT_EMBEDDING == "mean":
        out_ref[...] = (acc * (1.0 / float(num_layers + 1))).astype(out_ref.dtype)
    else:  # 'end'
        out_ref[...] = x.astype(out_ref.dtype)


# ---------------------------------------------------------------------------
# Path B: tiled y = A @ x, one pallas_call per LightGCN layer
# ---------------------------------------------------------------------------
def _spmm_tile_kernel(a_ref, x_ref, o_ref, acc_ref):
    """One (row-tile, K-tile) step of y = A @ x with an f32 accumulator scratch."""
    @pl.when(pl.program_id(1) == 0)
    def _():
        acc_ref[...] = jnp.zeros_like(acc_ref)

    acc_ref[...] += jnp.dot(a_ref[...], x_ref[...],
                            preferred_element_type=jnp.float32)

    @pl.when(pl.program_id(1) == pl.num_programs(1) - 1)
    def _():
        o_ref[...] = acc_ref[...].astype(o_ref.dtype)


def _propagate_tiled(a_bf16, x_bf16, block_m, block_k):
    n_pad, d = a_bf16.shape[0], x_bf16.shape[1]
    grid = (n_pad // block_m, n_pad // block_k)
    vmem_limit = _vmem_limit(
        2 * block_m * block_k * 2,   # A tile, double-buffered, bf16
        2 * block_k * d * 2,         # x tile, double-buffered, bf16
        2 * block_m * d * 4,         # out tile, double-buffered, f32
        block_m * d * 4,             # accumulator scratch, f32
    )
    return pl.pallas_call(
        _spmm_tile_kernel,
        out_shape=jax.ShapeDtypeStruct((n_pad, d), jnp.float32),
        grid=grid,
        in_specs=[
            pl.BlockSpec((block_m, block_k), lambda i, k: (i, k)),  # A[to, from]
            pl.BlockSpec((block_k, d), lambda i, k: (k, 0)),        # x_k slab
        ],
        out_specs=pl.BlockSpec((block_m, d), lambda i, k: (i, 0)),
        scratch_shapes=[pltpu.VMEM((block_m, d), jnp.float32)],
        compiler_params=pltpu.CompilerParams(
            dimension_semantics=("parallel", "arbitrary"),
            vmem_limit_bytes=vmem_limit,
        ),
    )(a_bf16, x_bf16)


# ---------------------------------------------------------------------------
# Forward wrapper
# ---------------------------------------------------------------------------
def lightgcn_forward(embedding_weight, edge_list, num_layers, *,
                     block_m=256, block_k=512, force_tiled=False):
    """LightGCN.forward(edge_list) -> (emb0, out).

    embedding_weight : [N, D] f32 (N = num_users + num_items)
    edge_list        : [2, E] int32 (row 0 = from_, row 1 = to_)
    """
    n_nodes, latent_dim = embedding_weight.shape

    # --- glue (plain JAX): dense normalized adjacency, then bf16 for the MXU ---
    adj = _normalized_dense_adjacency(n_nodes, edge_list, embedding_weight.dtype)

    use_resident = (not force_tiled) and n_nodes <= 1024
    if use_resident:
        n_pad = _round_up(n_nodes, 128)
        a = _pad2d(adj, n_pad, n_pad).astype(jnp.bfloat16)
        x0 = _pad2d(embedding_weight, n_pad, latent_dim).astype(jnp.float32)
        vmem_limit = _vmem_limit(
            2 * n_pad * n_pad * 2,            # A (bf16), double-buffer headroom
            2 * 2 * n_pad * latent_dim * 4,   # x0 + out (f32)
        )
        out = pl.pallas_call(
            functools.partial(_lightgcn_resident_kernel, num_layers=num_layers),
            out_shape=jax.ShapeDtypeStruct((n_pad, latent_dim), jnp.float32),
            grid=(1,),
            in_specs=[
                pl.BlockSpec((n_pad, n_pad), lambda i: (0, 0)),
                pl.BlockSpec((n_pad, latent_dim), lambda i: (0, 0)),
            ],
            out_specs=pl.BlockSpec((n_pad, latent_dim), lambda i: (0, 0)),
            compiler_params=pltpu.CompilerParams(
                dimension_semantics=("arbitrary",),
                vmem_limit_bytes=vmem_limit,
            ),
        )(a, x0)
        out = out[:n_nodes]
    else:
        assert block_m % 8 == 0 and block_k % 128 == 0, "tile shape must respect (8,128)"
        n_pad = _round_up(n_nodes, math.lcm(block_m, block_k))
        a = _pad2d(adj, n_pad, n_pad).astype(jnp.bfloat16)
        x = _pad2d(embedding_weight, n_pad, latent_dim).astype(jnp.float32)
        acc = x                                  # layer-0 contribution in exact f32
        for _ in range(num_layers):
            # per-layer pallas_call => natural barrier between layers; the
            # "parallel" row axis inside each call exploits both v7x TensorCores.
            x = _propagate_tiled(a, x.astype(jnp.bfloat16), block_m, block_k)
            acc = acc + x
        out = acc * (1.0 / float(num_layers + 1)) if OUTPUT_EMBEDDING == "mean" else x
        out = out[:n_nodes]

    return embedding_weight, out.astype(embedding_weight.dtype)


# ---------------------------------------------------------------------------
# References
# ---------------------------------------------------------------------------
def lightgcn_ref(embedding_weight, edge_list, num_layers):
    """Pure-JAX f32 reference mirroring the PyTorch/PyG semantics (scatter-add)."""
    from_, to_ = edge_list[0], edge_list[1]
    n = embedding_weight.shape[0]
    deg = jnp.zeros((n,), embedding_weight.dtype).at[to_].add(1.0)
    dis = jnp.where(deg > 0, 1.0 / jnp.sqrt(deg), 0.0)
    norm = dis[from_] * dis[to_]
    x = embedding_weight
    embs = [x]
    for _ in range(num_layers):
        msgs = norm[:, None] * x[from_]          # message(x_j, norm)
        x = jnp.zeros_like(x).at[to_].add(msgs)  # aggr='add' at target nodes
        embs.append(x)
    stacked = jnp.stack(embs, axis=0)
    out = jnp.mean(stacked, axis=0) if OUTPUT_EMBEDDING == "mean" else embs[-1]
    return embedding_weight, out


def lightgcn_bf16_dense_ref(embedding_weight, edge_list, num_layers):
    """Mirrors the kernel's numerics (dense bf16 adjacency, f32 accumulation)."""
    n, d = embedding_weight.shape
    a = _normalized_dense_adjacency(n, edge_list, embedding_weight.dtype)
    a = a.astype(jnp.bfloat16)
    x = embedding_weight.astype(jnp.float32)
    acc = x
    for _ in range(num_layers):
        x = jnp.dot(a, x.astype(jnp.bfloat16), preferred_element_type=jnp.float32)
        acc = acc + x
    return acc / (num_layers + 1) if OUTPUT_EMBEDDING == "mean" else x


# ---------------------------------------------------------------------------
# Test
# ---------------------------------------------------------------------------
def _make_graph(key, num_users, num_items, n_inter):
    k_u, k_i = jax.random.split(key)
    users = jax.random.randint(k_u, (n_inter,), 0, num_users, dtype=jnp.int32)
    items = num_users + jax.random.randint(k_i, (n_inter,), 0, num_items,
                                           dtype=jnp.int32)
    from_ = jnp.concatenate([users, items])
    to_ = jnp.concatenate([items, users])
    return jnp.stack([from_, to_], axis=0)  # [2, 2*n_inter] int32


if __name__ == "__main__":
    num_layers = 3
    latent_dim = 32
    key = jax.random.PRNGKey(0)
    k1, k2, k3, k4 = jax.random.split(key, 4)

    # ---- test 1: toy graph -> resident-A path ------------------------------
    num_users, num_items = 6, 10
    n_nodes = num_users + num_items
    emb = 0.1 * jax.random.normal(k1, (n_nodes, latent_dim), dtype=jnp.float32)
    edges = _make_graph(k2, num_users, num_items, n_inter=24)

    emb0, out = lightgcn_forward(emb, edges, num_layers)
    jax.block_until_ready(out)

    emb0_ref, out_f32 = lightgcn_ref(emb, edges, num_layers)
    out_bf16 = lightgcn_bf16_dense_ref(emb, edges, num_layers)
    assert out.shape == (n_nodes, latent_dim)
    assert jnp.allclose(emb0, emb0_ref)
    # tight check vs. an identical-numerics dense bf16 reference
    assert jnp.allclose(out, out_bf16, atol=1e-4, rtol=1e-4)
    # semantic check vs. the exact f32 scatter-add reference (bf16 tolerance)
    assert jnp.allclose(out, out_f32, atol=5e-3, rtol=5e-2)

    # ---- test 2: larger graph -> tiled per-layer path -----------------------
    num_users, num_items = 96, 224
    n_nodes = num_users + num_items
    emb = 0.1 * jax.random.normal(k3, (n_nodes, latent_dim), dtype=jnp.float32)
    edges = _make_graph(k4, num_users, num_items, n_inter=1500)

    _, out_f32 = lightgcn_ref(emb, edges, num_layers)
    out_bf16 = lightgcn_bf16_dense_ref(emb, edges, num_layers)

    # small tiles: exercises the parallel row axis AND the K accumulation loop
    _, out_small = lightgcn_forward(emb, edges, num_layers,
                                    block_m=64, block_k=128, force_tiled=True)
    jax.block_until_ready(out_small)
    assert jnp.allclose(out_small, out_bf16, atol=1e-4, rtol=1e-4)
    assert jnp.allclose(out_small, out_f32, atol=5e-3, rtol=5e-2)

    # production tile sizes (256 x 512 bf16)
    _, out_big = lightgcn_forward(emb, edges, num_layers, force_tiled=True)
    jax.block_until_ready(out_big)
    assert jnp.allclose(out_big, out_bf16, atol=1e-4, rtol=1e-4)
    assert jnp.allclose(out_big, out_f32, atol=5e-3, rtol=5e-2)

    print("KERNEL_OK")
</pallas_src>

<mosaic_0001>
module attributes {stable_mosaic.version = 11 : i64} {
  func.func @_lightgcn_resident_kernel(%arg0: i32, %arg1: memref<128x128xbf16, #tpu.memory_space<vmem>>, %arg2: memref<128x32xf32, #tpu.memory_space<vmem>>, %arg3: memref<128x32xf32, #tpu.memory_space<vmem>>) attributes {dimension_semantics = [#tpu.dimension_semantics<arbitrary>], iteration_bounds = array<i64: 1>, scalar_prefetch = 0 : i64, scratch_operands = 0 : i64, tpu.core_type = #tpu.core_type<tc>, window_params = [{pipeline_mode = #tpu.pipeline_mode<synchronous>, transform_indices = @transform_0, window_bounds = array<i64: 128, 128>}, {pipeline_mode = #tpu.pipeline_mode<synchronous>, transform_indices = @transform_1, window_bounds = array<i64: 128, 32>}, {pipeline_mode = #tpu.pipeline_mode<synchronous>, transform_indices = @transform_2, window_bounds = array<i64: 128, 32>}]} {
    %c0 = arith.constant 0 : index
    %c0_0 = arith.constant 0 : index
    %0 = vector.load %arg1[%c0, %c0_0] : memref<128x128xbf16, #tpu.memory_space<vmem>>, vector<128x128xbf16>
    %c0_1 = arith.constant 0 : index
    %c0_2 = arith.constant 0 : index
    %1 = vector.load %arg2[%c0_1, %c0_2] : memref<128x32xf32, #tpu.memory_space<vmem>>, vector<128x32xf32>
    %2 = arith.truncf %1 : vector<128x32xf32> to vector<128x32xbf16>
    %cst = arith.constant dense<0.000000e+00> : vector<128x32xf32>
    %3 = tpu.matmul %0, %2, %cst {dimension_numbers = #tpu.dot_dimension_numbers<[1], [0], [0], [1], [0, 0, 1, 1], [], []>} : vector<128x128xbf16>, vector<128x32xbf16>, vector<128x32xf32> -> vector<128x32xf32>
    %4 = arith.addf %1, %3 : vector<128x32xf32>
    %5 = arith.truncf %3 : vector<128x32xf32> to vector<128x32xbf16>
    %cst_3 = arith.constant dense<0.000000e+00> : vector<128x32xf32>
    %6 = tpu.matmul %0, %5, %cst_3 {dimension_numbers = #tpu.dot_dimension_numbers<[1], [0], [0], [1], [0, 0, 1, 1], [], []>} : vector<128x128xbf16>, vector<128x32xbf16>, vector<128x32xf32> -> vector<128x32xf32>
    %7 = arith.addf %4, %6 : vector<128x32xf32>
    %8 = arith.truncf %6 : vector<128x32xf32> to vector<128x32xbf16>
    %cst_4 = arith.constant dense<0.000000e+00> : vector<128x32xf32>
    %9 = tpu.matmul %0, %8, %cst_4 {dimension_numbers = #tpu.dot_dimension_numbers<[1], [0], [0], [1], [0, 0, 1, 1], [], []>} : vector<128x128xbf16>, vector<128x32xbf16>, vector<128x32xf32> -> vector<128x32xf32>
    %10 = arith.addf %7, %9 : vector<128x32xf32>
    %cst_5 = arith.constant 2.500000e-01 : f32
    %11 = vector.broadcast %cst_5 : f32 to vector<128x32xf32>
    %12 = arith.mulf %10, %11 : vector<128x32xf32>
    %c0_6 = arith.constant 0 : index
    %c0_7 = arith.constant 0 : index
    %13 = vector.load %arg3[%c0_6, %c0_7] : memref<128x32xf32, #tpu.memory_space<vmem>>, vector<128x32xf32>
    tpu.vector_store %arg3[%c0_6, %c0_7], %12 {strides = array<i32>} : memref<128x32xf32, #tpu.memory_space<vmem>>, vector<128x32xf32>,
    return
  }
  func.func @transform_0(%arg0: i32) -> (i32, i32) {
    %c0_i32 = arith.constant 0 : i32
    %c0_i32_0 = arith.constant 0 : i32
    %c0_i32_1 = arith.constant 0 : i32
    return %c0_i32, %c0_i32_0 : i32, i32
  }
  func.func @transform_1(%arg0: i32) -> (i32, i32) {
    %c0_i32 = arith.constant 0 : i32
    %c0_i32_0 = arith.constant 0 : i32
    %c0_i32_1 = arith.constant 0 : i32
    return %c0_i32, %c0_i32_0 : i32, i32
  }
  func.func @transform_2(%arg0: i32) -> (i32, i32) {
    %c0_i32 = arith.constant 0 : i32
    %c0_i32_0 = arith.constant 0 : i32
    %c0_i32_1 = arith.constant 0 : i32
    return %c0_i32, %c0_i32_0 : i32, i32
  }
}

</mosaic_0001>

<llo_original>
// kernel: tpu_custom_call.1
$region0: #{tpu_custom_call.1}
  #allocation0 [shape = 'u32[]', space=smem, size = 0x4, offset = 0x4, fixed_abs, tag = 'smem constant byte address 0x4 - core index']
  #allocation1 [shape = 'u32[144,128]{1,0:T(1,128)}', space=vmem, size = 0x12000, scoped, tag = 'internal scratch']
  %s0 = inlined_call_operand.vmem [shape: bf16[128,128], index: 0, kind: input, shape index: {}]
  %s1 = inlined_call_operand.vmem [shape: f32[128,32], index: 1, kind: input, shape index: {}]
  %s2 = inlined_call_operand.vmem [shape: f32[128,32], index: 2, kind: output, shape index: {}]
  %s3 = sld [smem:[#allocation0]]
  $region18: #{tpu_custom_call.1} parent=0
    _
  %s5 = ssub.s32 1, %s3
  %s6 = scalar_select 0, %s5, %s3
  // Predicated region
  $region2: #{tpu_custom_call.1} parent=0 // pred_check
    _
  $region3: #{tpu_custom_call.1} parent=0 // pred_check_branch
    %8 = sbr.rel (0) target = $region5
  $region4: #{tpu_custom_call.1} parent=0 // pred_region
    _
  $region5: #{tpu_custom_call.1} parent=0 // pred_fallthru
    _
  // Predicated region
  $region6: #{tpu_custom_call.1} parent=0 // pred_check
    _
  $region7: #{tpu_custom_call.1} parent=0 // pred_check_branch
    %10 = sbr.rel (0) target = $region9
  $region8: #{tpu_custom_call.1} parent=0 // pred_region
    _
  $region9: #{tpu_custom_call.1} parent=0 // pred_fallthru
    _
  %v12 = vld [vmem:[%s0] sm:$0xf]
  %v13 = vld [vmem:[%s0 + $0x4] sm:$0xf]
  %v14 = vld [vmem:[%s0 + $0x8] sm:$0xf]
  %v15 = vld [vmem:[%s0 + $0xc] sm:$0xf]
  %v16 = vld [vmem:[%s0 + $0x10] sm:$0xf]
  %v17 = vld [vmem:[%s0 + $0x14] sm:$0xf]
  %v18 = vld [vmem:[%s0 + $0x18] sm:$0xf]
  %v19 = vld [vmem:[%s0 + $0x1c] sm:$0xf]
  %v20 = vld [vmem:[%s0 + $0x20] sm:$0xf]
  %v21 = vld [vmem:[%s0 + $0x24] sm:$0xf]
  %v22 = vld [vmem:[%s0 + $0x28] sm:$0xf]
  %v23 = vld [vmem:[%s0 + $0x2c] sm:$0xf]
  %v24 = vld [vmem:[%s0 + $0x30] sm:$0xf]
  %v25 = vld [vmem:[%s0 + $0x34] sm:$0xf]
  %v26 = vld [vmem:[%s0 + $0x38] sm:$0xf]
  %v27 = vld [vmem:[%s0 + $0x3c] sm:$0xf]
  %v28 = vld [vmem:[%s1] sm:$0xff]
  %v29 = vld [vmem:[%s1 + $0x8] sm:$0xff]
  %v30 = vld [vmem:[%s1 + $0x10] sm:$0xff]
  %v31 = vld [vmem:[%s1 + $0x18] sm:$0xff]
  %v32 = vld [vmem:[%s1 + $0x20] sm:$0xff]
  %v33 = vld [vmem:[%s1 + $0x28] sm:$0xff]
  %v34 = vld [vmem:[%s1 + $0x30] sm:$0xff]
  %v35 = vld [vmem:[%s1 + $0x38] sm:$0xff]
  %v36 = vld [vmem:[%s1 + $0x40] sm:$0xff]
  %v37 = vld [vmem:[%s1 + $0x48] sm:$0xff]
  %v38 = vld [vmem:[%s1 + $0x50] sm:$0xff]
  %v39 = vld [vmem:[%s1 + $0x58] sm:$0xff]
  %v40 = vld [vmem:[%s1 + $0x60] sm:$0xff]
  %v41 = vld [vmem:[%s1 + $0x68] sm:$0xff]
  %v42 = vld [vmem:[%s1 + $0x70] sm:$0xff]
  %v43 = vld [vmem:[%s1 + $0x78] sm:$0xff]
  %v44 = vpack.c.bf16 %v29, %v28
  %v45 = vpack.c.bf16 %v31, %v30
  %v46 = vpack.c.bf16 %v33, %v32
  %v47 = vpack.c.bf16 %v35, %v34
  %v48 = vpack.c.bf16 %v37, %v36
  %v49 = vpack.c.bf16 %v39, %v38
  %v50 = vpack.c.bf16 %v41, %v40
  %v51 = vpack.c.bf16 %v43, %v42
  %v68 = vunpack.c.l.b16 %v12
  %v69 = vunpack.c.l.b16 %v13
  %v70 = vunpack.c.l.b16 %v14
  %v71 = vunpack.c.l.b16 %v15
  %v72 = vunpack.c.l.b16 %v16
  %v73 = vunpack.c.l.b16 %v17
  %v74 = vunpack.c.l.b16 %v18
  %v75 = vunpack.c.l.b16 %v19
  %v76 = vunpack.c.l.b16 %v20
  %v77 = vunpack.c.l.b16 %v21
  %v78 = vunpack.c.l.b16 %v22
  %v79 = vunpack.c.l.b16 %v23
  %v80 = vunpack.c.l.b16 %v24
  %v81 = vunpack.c.l.b16 %v25
  %v82 = vunpack.c.l.b16 %v26
  %v83 = vunpack.c.l.b16 %v27
  %v84 = vpack.c.b16 %v69, %v68
  %v85 = vpack.c.b16 %v71, %v70
  %v86 = vpack.c.b16 %v73, %v72
  %v87 = vpack.c.b16 %v75, %v74
  %v88 = vpack.c.b16 %v77, %v76
  %v89 = vpack.c.b16 %v79, %v78
  %v90 = vpack.c.b16 %v81, %v80
  %v91 = vpack.c.b16 %v83, %v82
  %100 = vmatprep.subr.bf16.mxu0 0
  %101 = vmatpush1.bf16.msra.mxu0 %v44
  %102 = vmatprep.subr.bf16.mxu0 0
  %103 = vmatpush1.bf16.msra.mxu0 %v45
  %104 = vmatprep.subr.bf16.mxu0 0
  %105 = vmatpush1.bf16.msra.mxu0 %v46
  %106 = vmatprep.subr.bf16.mxu0 0
  %107 = vmatpush1.bf16.msra.mxu0 %v47
  %108 = vmatprep.subr.bf16.mxu0 0
  %109 = vmatpush1.bf16.msra.mxu0 %v48
  %110 = vmatprep.subr.bf16.mxu0 0
  %111 = vmatpush1.bf16.msra.mxu0 %v49
  %112 = vmatprep.subr.bf16.mxu0 0
  %113 = vmatpush1.bf16.msra.mxu0 %v50
  %114 = vmatprep.subr.bf16.mxu0 0
  %115 = vmatpush1.bf16.msra.mxu0 %v51
  %116 = vmatprep.subr.bf16.mxu0 0
  %117 = vmatpush1.bf16.msra.mxu0 0
  %118 = vmatprep.subr.bf16.mxu0 0
  %119 = vmatpush1.bf16.msra.mxu0 0
  %120 = vmatprep.subr.bf16.mxu0 0
  %121 = vmatpush1.bf16.msra.mxu0 0
  %122 = vmatprep.subr.bf16.mxu0 0
  %123 = vmatpush1.bf16.msra.mxu0 0
  %124 = vmatprep.subr.bf16.mxu0 0
  %125 = vmatpush1.bf16.msra.mxu0 0
  %126 = vmatprep.subr.bf16.mxu0 0
  %127 = vmatpush1.bf16.msra.mxu0 0
  %128 = vmatprep.subr.bf16.mxu0 0
  %129 = vmatpush1.bf16.msra.mxu0 0
  %130 = vmatprep.subr.bf16.mxu0 0
  %131 = vmatpush1.bf16.msra.mxu0 0
  %132 = vmatprep.mubr.bf16.mxu0 0
  %133 = vmatmul.mubr.bf16.gmra.mrb[0].mxu0 %v84
  %v134 = vpop.f32.mrb[0].mxu0
  %v135 = vadd.f32 0.0, %v134
  %v136 = vpop.f32.mrb[0].mxu0
  %v137 = vpop.f32.mrb[0].mxu0
  %v138 = vadd.f32 0.0, %v137
  %v139 = vpop.f32.mrb[0].mxu0
  %140 = vmatprep.mubr.bf16.mxu0 0
  %141 = vmatmul.mubr.bf16.gmra.mrb[0].mxu0 %v85
  %v142 = vpop.f32.mrb[0].mxu0
  %v143 = vadd.f32 0.0, %v142
  %v144 = vpop.f32.mrb[0].mxu0
  %v145 = vpop.f32.mrb[0].mxu0
  %v146 = vadd.f32 0.0, %v145
  %v147 = vpop.f32.mrb[0].mxu0
  %148 = vmatprep.mubr.bf16.mxu0 0
  %149 = vmatmul.mubr.bf16.gmra.mrb[0].mxu0 %v86
  %v150 = vpop.f32.mrb[0].mxu0
  %v151 = vadd.f32 0.0, %v150
  %v152 = vpop.f32.mrb[0].mxu0
  %v153 = vpop.f32.mrb[0].mxu0
  %v154 = vadd.f32 0.0, %v153
  %v155 = vpop.f32.mrb[0].mxu0
  %156 = vmatprep.mubr.bf16.mxu0 0
  %157 = vmatmul.mubr.bf16.gmra.mrb[0].mxu0 %v87
  %v158 = vpop.f32.mrb[0].mxu0
  %v159 = vadd.f32 0.0, %v158
  %v160 = vpop.f32.mrb[0].mxu0
  %v161 = vpop.f32.mrb[0].mxu0
  %v162 = vadd.f32 0.0, %v161
  %v163 = vpop.f32.mrb[0].mxu0
  %164 = vmatprep.mubr.bf16.mxu0 0
  %165 = vmatmul.mubr.bf16.gmra.mrb[0].mxu0 %v88
  %v166 = vpop.f32.mrb[0].mxu0
  %v167 = vadd.f32 0.0, %v166
  %v168 = vpop.f32.mrb[0].mxu0
  %v169 = vpop.f32.mrb[0].mxu0
  %v170 = vadd.f32 0.0, %v169
  %v171 = vpop.f32.mrb[0].mxu0
  %172 = vmatprep.mubr.bf16.mxu0 0
  %173 = vmatmul.mubr.bf16.gmra.mrb[0].mxu0 %v89
  %v174 = vpop.f32.mrb[0].mxu0
  %v175 = vadd.f32 0.0, %v174
  %v176 = vpop.f32.mrb[0].mxu0
  %v177 = vpop.f32.mrb[0].mxu0
  %v178 = vadd.f32 0.0, %v177
  %v179 = vpop.f32.mrb[0].mxu0
  %180 = vmatprep.mubr.bf16.mxu0 0
  %181 = vmatmul.mubr.bf16.gmra.mrb[0].mxu0 %v90
  %v182 = vpop.f32.mrb[0].mxu0
  %v183 = vadd.f32 0.0, %v182
  %v184 = vpop.f32.mrb[0].mxu0
  %v185 = vpop.f32.mrb[0].mxu0
  %v186 = vadd.f32 0.0, %v185
  %v187 = vpop.f32.mrb[0].mxu0
  %188 = vmatprep.mubr.bf16.mxu0 0
  %189 = vmatmul.mubr.bf16.gmra.mrb[0].mxu0 %v91
  %v190 = vpop.f32.mrb[0].mxu0
  %v191 = vadd.f32 0.0, %v190
  %v192 = vpop.f32.mrb[0].mxu0
  %v193 = vpop.f32.mrb[0].mxu0
  %v194 = vadd.f32 0.0, %v193
  %v195 = vpop.f32.mrb[0].mxu0
  %196 = vdwg.mxu0
  %v197 = vadd.f32 %v28, %v135
  %v198 = vadd.f32 %v29, %v138
  %v199 = vadd.f32 %v30, %v143
  %v200 = vadd.f32 %v31, %v146
  %v201 = vadd.f32 %v32, %v151
  %v202 = vadd.f32 %v33, %v154
  %v203 = vadd.f32 %v34, %v159
  %v204 = vadd.f32 %v35, %v162
  %v205 = vadd.f32 %v36, %v167
  %v206 = vadd.f32 %v37, %v170
  %v207 = vadd.f32 %v38, %v175
  %v208 = vadd.f32 %v39, %v178
  %v209 = vadd.f32 %v40, %v183
  %v210 = vadd.f32 %v41, %v186
  %v211 = vadd.f32 %v42, %v191
  %v212 = vadd.f32 %v43, %v194
  %v213 = vpack.c.bf16 %v138, %v135
  %v214 = vpack.c.bf16 %v146, %v143
  %v215 = vpack.c.bf16 %v154, %v151
  %v216 = vpack.c.bf16 %v162, %v159
  %v217 = vpack.c.bf16 %v170, %v167
  %v218 = vpack.c.bf16 %v178, %v175
  %v219 = vpack.c.bf16 %v186, %v183
  %v220 = vpack.c.bf16 %v194, %v191
  %221 = vmatprep.subr.bf16.mxu0 0
  %222 = vmatpush1.bf16.msra.mxu0 %v213
  %223 = vmatprep.subr.bf16.mxu0 0
  %224 = vmatpush1.bf16.msra.mxu0 %v214
  %225 = vmatprep.subr.bf16.mxu0 0
  %226 = vmatpush1.bf16.msra.mxu0 %v215
  %227 = vmatprep.subr.bf16.mxu0 0
  %228 = vmatpush1.bf16.msra.mxu0 %v216
  %229 = vmatprep.subr.bf16.mxu0 0
  %230 = vmatpush1.bf16.msra.mxu0 %v217
  %231 = vmatprep.subr.bf16.mxu0 0
  %232 = vmatpush1.bf16.msra.mxu0 %v218
  %233 = vmatprep.subr.bf16.mxu0 0
  %234 = vmatpush1.bf16.msra.mxu0 %v219
  %235 = vmatprep.subr.bf16.mxu0 0
  %236 = vmatpush1.bf16.msra.mxu0 %v220
  %237 = vmatprep.subr.bf16.mxu0 0
  %238 = vmatpush1.bf16.msra.mxu0 0
  %239 = vmatprep.subr.bf16.mxu0 0
  %240 = vmatpush1.bf16.msra.mxu0 0
  %241 = vmatprep.subr.bf16.mxu0 0
  %242 = vmatpush1.bf16.msra.mxu0 0
  %243 = vmatprep.subr.bf16.mxu0 0
  %244 = vmatpush1.bf16.msra.mxu0 0
  %245 = vmatprep.subr.bf16.mxu0 0
  %246 = vmatpush1.bf16.msra.mxu0 0
  %247 = vmatprep.subr.bf16.mxu0 0
  %248 = vmatpush1.bf16.msra.mxu0 0
  %249 = vmatprep.subr.bf16.mxu0 0
  %250 = vmatpush1.bf16.msra.mxu0 0
  %251 = vmatprep.subr.bf16.mxu0 0
  %252 = vmatpush1.bf16.msra.mxu0 0
  %253 = vmatprep.mubr.bf16.mxu0 0
  %254 = vmatmul.mubr.bf16.gmra.mrb[0].mxu0 %v84
  %v255 = vpop.f32.mrb[0].mxu0
  %v256 = vadd.f32 0.0, %v255
  %v257 = vpop.f32.mrb[0].mxu0
  %v258 = vpop.f32.mrb[0].mxu0
  %v259 = vadd.f32 0.0, %v258
  %v260 = vpop.f32.mrb[0].mxu0
  %261 = vmatprep.mubr.bf16.mxu0 0
  %262 = vmatmul.mubr.bf16.gmra.mrb[0].mxu0 %v85
  %v263 = vpop.f32.mrb[0].mxu0
  %v264 = vadd.f32 0.0, %v263
  %v265 = vpop.f32.mrb[0].mxu0
  %v266 = vpop.f32.mrb[0].mxu0
  %v267 = vadd.f32 0.0, %v266
  %v268 = vpop.f32.mrb[0].mxu0
  %269 = vmatprep.mubr.bf16.mxu0 0
  %270 = vmatmul.mubr.bf16.gmra.mrb[0].mxu0 %v86
  %v271 = vpop.f32.mrb[0].mxu0
  %v272 = vadd.f32 0.0, %v271
  %v273 = vpop.f32.mrb[0].mxu0
  %v274 = vpop.f32.mrb[0].mxu0
  %v275 = vadd.f32 0.0, %v274
  %v276 = vpop.f32.mrb[0].mxu0
  %277 = vmatprep.mubr.bf16.mxu0 0
  %278 = vmatmul.mubr.bf16.gmra.mrb[0].mxu0 %v87
  %v279 = vpop.f32.mrb[0].mxu0
  %v280 = vadd.f32 0.0, %v279
  %v281 = vpop.f32.mrb[0].mxu0
  %v282 = vpop.f32.mrb[0].mxu0
  %v283 = vadd.f32 0.0, %v282
  %v284 = vpop.f32.mrb[0].mxu0
  %285 = vmatprep.mubr.bf16.mxu0 0
  %286 = vmatmul.mubr.bf16.gmra.mrb[0].mxu0 %v88
  %v287 = vpop.f32.mrb[0].mxu0
  %v288 = vadd.f32 0.0, %v287
  %v289 = vpop.f32.mrb[0].mxu0
  %v290 = vpop.f32.mrb[0].mxu0
  %v291 = vadd.f32 0.0, %v290
  %v292 = vpop.f32.mrb[0].mxu0
  %293 = vmatprep.mubr.bf16.mxu0 0
  %294 = vmatmul.mubr.bf16.gmra.mrb[0].mxu0 %v89
  %v295 = vpop.f32.mrb[0].mxu0
  %v296 = vadd.f32 0.0, %v295
  %v297 = vpop.f32.mrb[0].mxu0
  %v298 = vpop.f32.mrb[0].mxu0
  %v299 = vadd.f32 0.0, %v298
  %v300 = vpop.f32.mrb[0].mxu0
  %301 = vmatprep.mubr.bf16.mxu0 0
  %302 = vmatmul.mubr.bf16.gmra.mrb[0].mxu0 %v90
  %v303 = vpop.f32.mrb[0].mxu0
  %v304 = vadd.f32 0.0, %v303
  %v305 = vpop.f32.mrb[0].mxu0
  %v306 = vpop.f32.mrb[0].mxu0
  %v307 = vadd.f32 0.0, %v306
  %v308 = vpop.f32.mrb[0].mxu0
  %309 = vmatprep.mubr.bf16.mxu0 0
  %310 = vmatmul.mubr.bf16.gmra.mrb[0].mxu0 %v91
  %v311 = vpop.f32.mrb[0].mxu0
  %v312 = vadd.f32 0.0, %v311
  %v313 = vpop.f32.mrb[0].mxu0
  %v314 = vpop.f32.mrb[0].mxu0
  %v315 = vadd.f32 0.0, %v314
  %v316 = vpop.f32.mrb[0].mxu0
  %317 = vdwg.mxu0
  %v318 = vadd.f32 %v197, %v256
  %v319 = vadd.f32 %v198, %v259
  %v320 = vadd.f32 %v199, %v264
  %v321 = vadd.f32 %v200, %v267
  %v322 = vadd.f32 %v201, %v272
  %v323 = vadd.f32 %v202, %v275
  %v324 = vadd.f32 %v203, %v280
  %v325 = vadd.f32 %v204, %v283
  %v326 = vadd.f32 %v205, %v288
  %v327 = vadd.f32 %v206, %v291
  %v328 = vadd.f32 %v207, %v296
  %v329 = vadd.f32 %v208, %v299
  %v330 = vadd.f32 %v209, %v304
  %v331 = vadd.f32 %v210, %v307
  %v332 = vadd.f32 %v211, %v312
  %v333 = vadd.f32 %v212, %v315
  %v334 = vpack.c.bf16 %v259, %v256
  %v335 = vpack.c.bf16 %v267, %v264
  %v336 = vpack.c.bf16 %v275, %v272
  %v337 = vpack.c.bf16 %v283, %v280
  %v338 = vpack.c.bf16 %v291, %v288
  %v339 = vpack.c.bf16 %v299, %v296
  %v340 = vpack.c.bf16 %v307, %v304
  %v341 = vpack.c.bf16 %v315, %v312
  %342 = vmatprep.subr.bf16.mxu0 0
  %343 = vmatpush1.bf16.msra.mxu0 %v334
  %344 = vmatprep.subr.bf16.mxu0 0
  %345 = vmatpush1.bf16.msra.mxu0 %v335
  %346 = vmatprep.subr.bf16.mxu0 0
  %347 = vmatpush1.bf16.msra.mxu0 %v336
  %348 = vmatprep.subr.bf16.mxu0 0
  %349 = vmatpush1.bf16.msra.mxu0 %v337
  %350 = vmatprep.subr.bf16.mxu0 0
  %351 = vmatpush1.bf16.msra.mxu0 %v338
  %352 = vmatprep.subr.bf16.mxu0 0
  %353 = vmatpush1.bf16.msra.mxu0 %v339
  %354 = vmatprep.subr.bf16.mxu0 0
  %355 = vmatpush1.bf16.msra.mxu0 %v340
  %356 = vmatprep.subr.bf16.mxu0 0
  %357 = vmatpush1.bf16.msra.mxu0 %v341
  %358 = vmatprep.subr.bf16.mxu0 0
  %359 = vmatpush1.bf16.msra.mxu0 0
  %360 = vmatprep.subr.bf16.mxu0 0
  %361 = vmatpush1.bf16.msra.mxu0 0
  %362 = vmatprep.subr.bf16.mxu0 0
  %363 = vmatpush1.bf16.msra.mxu0 0
  %364 = vmatprep.subr.bf16.mxu0 0
  %365 = vmatpush1.bf16.msra.mxu0 0
  %366 = vmatprep.subr.bf16.mxu0 0
  %367 = vmatpush1.bf16.msra.mxu0 0
  %368 = vmatprep.subr.bf16.mxu0 0
  %369 = vmatpush1.bf16.msra.mxu0 0
  %370 = vmatprep.subr.bf16.mxu0 0
  %371 = vmatpush1.bf16.msra.mxu0 0
  %372 = vmatprep.subr.bf16.mxu0 0
  %373 = vmatpush1.bf16.msra.mxu0 0
  %374 = vmatprep.mubr.bf16.mxu0 0
  %375 = vmatmul.mubr.bf16.gmra.mrb[0].mxu0 %v84
  %v376 = vpop.f32.mrb[0].mxu0
  %v377 = vadd.f32 0.0, %v376
  %v378 = vpop.f32.mrb[0].mxu0
  %v379 = vpop.f32.mrb[0].mxu0
  %v380 = vadd.f32 0.0, %v379
  %v381 = vpop.f32.mrb[0].mxu0
  %382 = vmatprep.mubr.bf16.mxu0 0
  %383 = vmatmul.mubr.bf16.gmra.mrb[0].mxu0 %v85
  %v384 = vpop.f32.mrb[0].mxu0
  %v385 = vadd.f32 0.0, %v384
  %v386 = vpop.f32.mrb[0].mxu0
  %v387 = vpop.f32.mrb[0].mxu0
  %v388 = vadd.f32 0.0, %v387
  %v389 = vpop.f32.mrb[0].mxu0
  %390 = vmatprep.mubr.bf16.mxu0 0
  %391 = vmatmul.mubr.bf16.gmra.mrb[0].mxu0 %v86
  %v392 = vpop.f32.mrb[0].mxu0
  %v393 = vadd.f32 0.0, %v392
  %v394 = vpop.f32.mrb[0].mxu0
  %v395 = vpop.f32.mrb[0].mxu0
  %v396 = vadd.f32 0.0, %v395
  %v397 = vpop.f32.mrb[0].mxu0
  %398 = vmatprep.mubr.bf16.mxu0 0
  %399 = vmatmul.mubr.bf16.gmra.mrb[0].mxu0 %v87
  %v400 = vpop.f32.mrb[0].mxu0
  %v401 = vadd.f32 0.0, %v400
  %v402 = vpop.f32.mrb[0].mxu0
  %v403 = vpop.f32.mrb[0].mxu0
  %v404 = vadd.f32 0.0, %v403
  %v405 = vpop.f32.mrb[0].mxu0
  %406 = vmatprep.mubr.bf16.mxu0 0
  %407 = vmatmul.mubr.bf16.gmra.mrb[0].mxu0 %v88
  %v408 = vpop.f32.mrb[0].mxu0
  %v409 = vadd.f32 0.0, %v408
  %v410 = vpop.f32.mrb[0].mxu0
  %v411 = vpop.f32.mrb[0].mxu0
  %v412 = vadd.f32 0.0, %v411
  %v413 = vpop.f32.mrb[0].mxu0
  %414 = vmatprep.mubr.bf16.mxu0 0
  %415 = vmatmul.mubr.bf16.gmra.mrb[0].mxu0 %v89
  %v416 = vpop.f32.mrb[0].mxu0
  %v417 = vadd.f32 0.0, %v416
  %v418 = vpop.f32.mrb[0].mxu0
  %v419 = vpop.f32.mrb[0].mxu0
  %v420 = vadd.f32 0.0, %v419
  %v421 = vpop.f32.mrb[0].mxu0
  %422 = vmatprep.mubr.bf16.mxu0 0
  %423 = vmatmul.mubr.bf16.gmra.mrb[0].mxu0 %v90
  %v424 = vpop.f32.mrb[0].mxu0
  %v425 = vadd.f32 0.0, %v424
  %v426 = vpop.f32.mrb[0].mxu0
  %v427 = vpop.f32.mrb[0].mxu0
  %v428 = vadd.f32 0.0, %v427
  %v429 = vpop.f32.mrb[0].mxu0
  %430 = vmatprep.mubr.bf16.mxu0 0
  %431 = vmatmul.mubr.bf16.gmra.mrb[0].mxu0 %v91
  %v432 = vpop.f32.mrb[0].mxu0
  %v433 = vadd.f32 0.0, %v432
  %v434 = vpop.f32.mrb[0].mxu0
  %v435 = vpop.f32.mrb[0].mxu0
  %v436 = vadd.f32 0.0, %v435
  %v437 = vpop.f32.mrb[0].mxu0
  %438 = vdwg.mxu0
  %v439 = vadd.f32 %v318, %v377
  %v440 = vadd.f32 %v319, %v380
  %v441 = vadd.f32 %v320, %v385
  %v442 = vadd.f32 %v321, %v388
  %v443 = vadd.f32 %v322, %v393
  %v444 = vadd.f32 %v323, %v396
  %v445 = vadd.f32 %v324, %v401
  %v446 = vadd.f32 %v325, %v404
  %v447 = vadd.f32 %v326, %v409
  %v448 = vadd.f32 %v327, %v412
  %v449 = vadd.f32 %v328, %v417
  %v450 = vadd.f32 %v329, %v420
  %v451 = vadd.f32 %v330, %v425
  %v452 = vadd.f32 %v331, %v428
  %v453 = vadd.f32 %v332, %v433
  %v454 = vadd.f32 %v333, %v436
  %v455 = vmul.f32 %v439, 0.25
  %v456 = vmul.f32 %v440, 0.25
  %v457 = vmul.f32 %v441, 0.25
  %v458 = vmul.f32 %v442, 0.25
  %v459 = vmul.f32 %v443, 0.25
  %v460 = vmul.f32 %v444, 0.25
  %v461 = vmul.f32 %v445, 0.25
  %v462 = vmul.f32 %v446, 0.25
  %v463 = vmul.f32 %v447, 0.25
  %v464 = vmul.f32 %v448, 0.25
  %v465 = vmul.f32 %v449, 0.25
  %v466 = vmul.f32 %v450, 0.25
  %v467 = vmul.f32 %v451, 0.25
  %v468 = vmul.f32 %v452, 0.25
  %v469 = vmul.f32 %v453, 0.25
  %v470 = vmul.f32 %v454, 0.25
  %vm471 = vcmask 261120
  %472 = vst.msk [vmem:[%s2] sm:$0xff] %vm471, %v455
  %473 = vst.msk [vmem:[%s2 + $0x8] sm:$0xff] %vm471, %v456
  %474 = vst.msk [vmem:[%s2 + $0x10] sm:$0xff] %vm471, %v457
  %475 = vst.msk [vmem:[%s2 + $0x18] sm:$0xff] %vm471, %v458
  %476 = vst.msk [vmem:[%s2 + $0x20] sm:$0xff] %vm471, %v459
  %477 = vst.msk [vmem:[%s2 + $0x28] sm:$0xff] %vm471, %v460
  %478 = vst.msk [vmem:[%s2 + $0x30] sm:$0xff] %vm471, %v461
  %479 = vst.msk [vmem:[%s2 + $0x38] sm:$0xff] %vm471, %v462
  %480 = vst.msk [vmem:[%s2 + $0x40] sm:$0xff] %vm471, %v463
  %481 = vst.msk [vmem:[%s2 + $0x48] sm:$0xff] %vm471, %v464
  %482 = vst.msk [vmem:[%s2 + $0x50] sm:$0xff] %vm471, %v465
  %483 = vst.msk [vmem:[%s2 + $0x58] sm:$0xff] %vm471, %v466
  %484 = vst.msk [vmem:[%s2 + $0x60] sm:$0xff] %vm471, %v467
  %485 = vst.msk [vmem:[%s2 + $0x68] sm:$0xff] %vm471, %v468
  %486 = vst.msk [vmem:[%s2 + $0x70] sm:$0xff] %vm471, %v469
  %487 = vst.msk [vmem:[%s2 + $0x78] sm:$0xff] %vm471, %v470
  // Predicated region
  $region10: #{tpu_custom_call.1} parent=0 // pred_check
    _
  $region11: #{tpu_custom_call.1} parent=0 // pred_check_branch
    %489 = sbr.rel (0) target = $region13
  $region12: #{tpu_custom_call.1} parent=0 // pred_region
    _
  $region13: #{tpu_custom_call.1} parent=0 // pred_fallthru
    _
  // Predicated region
  $region14: #{tpu_custom_call.1} parent=0 // pred_check
    _
  $region15: #{tpu_custom_call.1} parent=0 // pred_check_branch
    %491 = sbr.rel (0) target = $region17
  $region16: #{tpu_custom_call.1} parent=0 // pred_region
    _
  $region17: #{tpu_custom_call.1} parent=0 // pred_fallthru
    _

</llo_original>
